<compile_context>
chip_gen: v5e
topology: v5e:2x2
jax: 0.10.0
libtpu: 0.0.40
codegen_flags: <defaults>
</compile_context>

<pallas_src>
import math

import jax
import jax.numpy as jnp
from jax.experimental import pallas as pl
from jax.experimental.pallas import tpu as pltpu


# ---------------------------------------------------------------------------
# Kernels
# ---------------------------------------------------------------------------
def _affine_kernel_packed(ss_ref, x_ref, out_ref):
    # ss_ref : [bt, ct, 2] f32  (lane 0 = scale, lane 1 = shift)
    # x_ref  : [bt, ct, st] activation dtype
    ss = ss_ref[...]
    scale = ss[:, :, 0:1]                      # [bt, ct, 1] -> lane broadcast
    shift = ss[:, :, 1:2]
    x = x_ref[...].astype(jnp.float32)
    out_ref[...] = (x * scale + shift).astype(out_ref.dtype)
    # TODO(synk): optional bf16 in-kernel math on v6e/v7x (skip the f32 upcast).


def _affine_kernel_full(scale_ref, shift_ref, x_ref, out_ref):
    # scale/shift already expanded to the x block shape (HW<128 grouped path).
    x = x_ref[...].astype(jnp.float32)
    out_ref[...] = (x * scale_ref[...] + shift_ref[...]).astype(out_ref.dtype)


# ---------------------------------------------------------------------------
# Per-chip byte budgets
# ---------------------------------------------------------------------------
def _vmem_budget():
    """(max bytes per x/out block, vmem_limit_bytes) chosen per chip."""
    try:
        info = pltpu.get_tpu_info()
        cap = int(getattr(info, "vmem_capacity_bytes", 64 * 1024 * 1024))
    except Exception:  # unknown target -> conservative defaults (fit v7x)
        cap = 64 * 1024 * 1024
    if cap >= 128 * 1024 * 1024:       # v5e / v6e: 128 MiB physical VMEM
        return 8 * 1024 * 1024, 64 * 1024 * 1024
    return 4 * 1024 * 1024, 32 * 1024 * 1024   # v7x (64 MiB physical)


# ---------------------------------------------------------------------------
# Tile selection helpers
# ---------------------------------------------------------------------------
def _largest_aligned_divisor(n, align, max_val):
    """Largest d with d | n, d % align == 0, d <= max_val.  None if no such d."""
    best = None
    limit = min(n, max_val)
    d = align
    while d <= limit:
        if n % d == 0:
            best = d
        d += align
    return best


def _choose_tiles(B, C, HW, itemsize, max_tile_bytes):
    # dtype-native sublane packing: f32 -> 8, bf16/f16 -> 16, int8/fp8 -> 32.
    sub_align = {4: 8, 2: 16, 1: 32}.get(itemsize, 8)

    # Spatial (lane) tile: largest multiple-of-128 divisor of HW under the cap.
    if HW % 128 == 0:
        lane_cap = max(128, (max_tile_bytes // (sub_align * itemsize)) // 128 * 128)
        st = _largest_aligned_divisor(HW, 128, min(HW, lane_cap)) or HW
    else:
        # TODO(synk): non-128-multiple spatial dims fall back to masked stores.
        st = HW

    # Channel (sublane) tile: largest aligned divisor of C under the byte cap.
    ct = None
    if C % sub_align == 0:
        ct_cap = max(sub_align, max_tile_bytes // max(1, st * itemsize))
        ct = _largest_aligned_divisor(C, sub_align, min(C, ct_cap))
    if ct is None:
        ct = C                                   # full dim (always legal)

    # Batch tile: only when one block already covers a whole image (tiny maps);
    # amortizes the ~0.35us per-grid-step overhead.
    bt = 1
    if ct == C and st == HW:
        per_img = C * HW * itemsize
        while (bt < B and B % (bt * 2) == 0
               and (bt * 2) * per_img <= max_tile_bytes):
            bt *= 2
    return bt, ct, st


def _choose_group(C, HW, max_lanes=1024):
    """For HW<128 maps, pick g channels to fold into the lane axis (g*HW lanes)."""
    if HW <= 0 or HW >= 128 or 128 % HW != 0:
        return None
    g0 = 128 // HW
    if C % g0 != 0:
        return None
    best = g0
    limit = min(C, max(g0, max_lanes // HW))
    m = g0
    while m <= limit:
        if C % m == 0:
            best = m
        m += g0
    return best


# ---------------------------------------------------------------------------
# Wrapper: BigGAN conditional batch norm (inference).
# ---------------------------------------------------------------------------
def biggan_batchnorm(x, truncation, condition_vector=None,
                     running_means=None, running_vars=None,
                     w_scale_sn=None, w_offset_sn=None,
                     weight=None, bias=None,
                     *, eps=1e-4, n_stats=51, donate_x=False):
    """Conditional (or unconditional) BigGAN batch norm, inference only.

    x                : [B, C, H, W]  activations (NCHW, any float dtype)
    truncation       : python float
    condition_vector : [B, D] or None (then `weight`/`bias` of shape [C] used)
    running_means    : [n_stats, C]
    running_vars     : [n_stats, C]
    w_scale_sn       : [C, D]  spectral-normalized weight of `scale` linear
    w_offset_sn      : [C, D]  spectral-normalized weight of `offset` linear
    """
    # --- running-stat interpolation (matches the PyTorch module exactly;
    #     note: coef on start_idx, (1-coef) on start_idx+1 is intentional) ---
    step_size = 1.0 / (n_stats - 1)
    coef, start_idx = math.modf(truncation / step_size)
    start_idx = int(start_idx)
    if coef != 0.0:
        running_mean = (running_means[start_idx] * coef
                        + running_means[start_idx + 1] * (1.0 - coef))
        running_var = (running_vars[start_idx] * coef
                       + running_vars[start_idx + 1] * (1.0 - coef))
    else:
        running_mean = running_means[start_idx]
        running_var = running_vars[start_idx]

    B, C, H, W = x.shape
    HW = H * W
    itemsize = jnp.dtype(x.dtype).itemsize
    max_tile_bytes, vmem_limit = _vmem_budget()

    # --- per-(batch, channel) affine terms in f32 (tiny matmuls, host/XLA) ---
    running_mean = running_mean.astype(jnp.float32)                     # [C]
    running_var = running_var.astype(jnp.float32)                       # [C]
    inv_std = jax.lax.rsqrt(running_var + jnp.float32(eps))             # [C]

    if condition_vector is not None:
        cond = condition_vector.astype(jnp.float32)                     # [B, D]
        w = 1.0 + cond @ w_scale_sn.astype(jnp.float32).T               # [B, C]
        b = cond @ w_offset_sn.astype(jnp.float32).T                    # [B, C]
    else:
        w = jnp.broadcast_to(weight.astype(jnp.float32)[None, :], (B, C))
        b = jnp.broadcast_to(bias.astype(jnp.float32)[None, :], (B, C))

    scale = w * inv_std[None, :]                                        # [B, C]
    shift = b - running_mean[None, :] * scale                           # [B, C]

    cost = pl.CostEstimate(flops=int(2 * B * C * HW),
                           transcendentals=0,
                           bytes_accessed=int(2 * B * C * HW * itemsize
                                              + 8 * B * C))

    g = _choose_group(C, HW)
    if g is not None:
        # ---- HW < 128: fold g channels into the lane axis (lane-dense out) --
        C_eff, L = C // g, g * HW
        x3 = x.reshape(B, C_eff, L)
        scale3 = jnp.repeat(scale.reshape(B, C_eff, g), HW, axis=-1)    # [B,C_eff,L]
        shift3 = jnp.repeat(shift.reshape(B, C_eff, g), HW, axis=-1)
        # 4 streamed arrays here -> halve the per-block byte budget.
        bt, ct, st = _choose_tiles(B, C_eff, L, itemsize, max_tile_bytes // 2)
        grid = (B // bt, C_eff // ct, L // st)
        blk = lambda bi, ci, si: (bi, ci, si)
        out3 = pl.pallas_call(
            _affine_kernel_full,
            out_shape=jax.ShapeDtypeStruct((B, C_eff, L), x.dtype),
            grid_spec=pltpu.PrefetchScalarGridSpec(
                num_scalar_prefetch=0,
                grid=grid,
                in_specs=[
                    pl.BlockSpec((bt, ct, st), blk),   # scale (expanded)
                    pl.BlockSpec((bt, ct, st), blk),   # shift (expanded)
                    pl.BlockSpec((bt, ct, st), blk),   # x
                ],
                out_specs=pl.BlockSpec((bt, ct, st), blk),
            ),
            compiler_params=pltpu.CompilerParams(
                dimension_semantics=("parallel", "parallel", "parallel"),
                vmem_limit_bytes=vmem_limit,
            ),
            cost_estimate=cost,
            input_output_aliases=({2: 0} if donate_x else {}),
        )(scale3, shift3, x3)
        return out3.reshape(B, C, H, W)

    # ---- standard path: [B, C, HW] tiles, packed [B, C, 2] scale/shift ------
    bt, ct, st = _choose_tiles(B, C, HW, itemsize, max_tile_bytes)
    x3 = x.reshape(B, C, HW)                     # keep caller's dtype end-to-end
    ss3 = jnp.concatenate([scale[..., None], shift[..., None]], axis=-1)  # [B,C,2]
    grid = (B // bt, C // ct, HW // st)

    out3 = pl.pallas_call(
        _affine_kernel_packed,
        out_shape=jax.ShapeDtypeStruct((B, C, HW), x.dtype),
        grid_spec=pltpu.PrefetchScalarGridSpec(
            num_scalar_prefetch=0,
            grid=grid,
            in_specs=[
                # scale/shift depend only on (batch, channel) block indices,
                # so they stay VMEM-resident across the spatial-tile axis.
                pl.BlockSpec((bt, ct, 2), lambda bi, ci, si: (bi, ci, 0)),
                pl.BlockSpec((bt, ct, st), lambda bi, ci, si: (bi, ci, si)),
            ],
            out_specs=pl.BlockSpec((bt, ct, st), lambda bi, ci, si: (bi, ci, si)),
        ),
        compiler_params=pltpu.CompilerParams(
            dimension_semantics=("parallel", "parallel", "parallel"),
            vmem_limit_bytes=vmem_limit,
        ),
        cost_estimate=cost,
        input_output_aliases=({1: 0} if donate_x else {}),
    )(ss3, x3)
    return out3.reshape(B, C, H, W)


# ---------------------------------------------------------------------------
# Parameter setup glue (plain JAX): spectral normalization of linear weights.
# TODO(synk): PyTorch eval-mode spectral_norm uses the checkpoint's stored `u`
# vector; a fresh power iteration matches only to convergence tolerance.
# ---------------------------------------------------------------------------
def spectral_normalize(w, eps=1e-12, n_iter=30):
    out_f = w.shape[0]
    u = jnp.ones((out_f,), dtype=w.dtype) / jnp.sqrt(jnp.float32(out_f))
    v = None
    for _ in range(n_iter):
        v = w.T @ u
        v = v / (jnp.linalg.norm(v) + eps)
        u = w @ v
        u = u / (jnp.linalg.norm(u) + eps)
    sigma = u @ (w @ v)
    return w / sigma


# Pure-JAX reference of the forward pass (for correctness check).
def biggan_batchnorm_ref(x, truncation, cond, running_means, running_vars,
                         w_scale_sn, w_offset_sn, *, eps=1e-4, n_stats=51):
    step_size = 1.0 / (n_stats - 1)
    coef, start_idx = math.modf(truncation / step_size)
    start_idx = int(start_idx)
    if coef != 0.0:
        rm = running_means[start_idx] * coef + running_means[start_idx + 1] * (1 - coef)
        rv = running_vars[start_idx] * coef + running_vars[start_idx + 1] * (1 - coef)
    else:
        rm = running_means[start_idx]
        rv = running_vars[start_idx]
    rm = rm[None, :, None, None]
    rv = rv[None, :, None, None]
    weight = 1.0 + (cond @ w_scale_sn.T)[:, :, None, None]
    bias = (cond @ w_offset_sn.T)[:, :, None, None]
    return (x - rm) / jnp.sqrt(rv + eps) * weight + bias


if __name__ == "__main__":
    key = jax.random.PRNGKey(0)
    k_x, k_c, k_ws, k_wo, k_rm, k_rv, k_x2, k_x3 = jax.random.split(key, 8)

    n_stats = 51
    eps = 1e-4
    truncation = 0.43                  # exercises the interpolation branch

    # --- primary check: small shapes consistent with the module ---
    B, C, H, W = 2, 4, 16, 16          # x: NCHW
    D = 16                             # condition_vector_dim

    x = jax.random.normal(k_x, (B, C, H, W), dtype=jnp.float32)
    cond = jax.random.normal(k_c, (B, D), dtype=jnp.float32)

    running_means = 0.1 * jax.random.normal(k_rm, (n_stats, C), dtype=jnp.float32)
    running_vars = 1.0 + 0.1 * jax.random.uniform(k_rv, (n_stats, C), dtype=jnp.float32)

    w_scale = jax.random.normal(k_ws, (C, D), dtype=jnp.float32) / jnp.sqrt(D)
    w_offset = jax.random.normal(k_wo, (C, D), dtype=jnp.float32) / jnp.sqrt(D)
    w_scale_sn = spectral_normalize(w_scale)
    w_offset_sn = spectral_normalize(w_offset)

    out = biggan_batchnorm(x, truncation, cond, running_means, running_vars,
                           w_scale_sn, w_offset_sn, eps=eps, n_stats=n_stats)
    out = jax.block_until_ready(out)
    ref = biggan_batchnorm_ref(x, truncation, cond, running_means, running_vars,
                               w_scale_sn, w_offset_sn, eps=eps, n_stats=n_stats)
    assert out.shape == (B, C, H, W)
    assert jnp.allclose(out, ref, atol=1e-4, rtol=1e-4), "mismatch (small)"

    # --- multi-tile grid path (channel tiling + large lane-dense blocks) ---
    B2, C2, H2, W2 = 2, 512, 64, 64    # HW=4096
    rm2 = 0.1 * jax.random.normal(k_rm, (n_stats, C2), dtype=jnp.float32)
    rv2 = 1.0 + 0.1 * jax.random.uniform(k_rv, (n_stats, C2), dtype=jnp.float32)
    ws2 = spectral_normalize(
        jax.random.normal(k_ws, (C2, D), dtype=jnp.float32) / jnp.sqrt(D))
    wo2 = spectral_normalize(
        jax.random.normal(k_wo, (C2, D), dtype=jnp.float32) / jnp.sqrt(D))
    x2 = jax.random.normal(k_x2, (B2, C2, H2, W2), dtype=jnp.float32)

    out2 = jax.block_until_ready(
        biggan_batchnorm(x2, truncation, cond, rm2, rv2, ws2, wo2,
                         eps=eps, n_stats=n_stats))
    ref2 = biggan_batchnorm_ref(x2, truncation, cond, rm2, rv2, ws2, wo2,
                                eps=eps, n_stats=n_stats)
    assert jnp.allclose(out2, ref2, atol=1e-4, rtol=1e-4), "mismatch (tiled)"

    # --- HW < 128 grouped (lane-dense) path: 8x8 feature maps ---
    B3, C3, H3, W3 = 2, 32, 8, 8
    rm3 = 0.1 * jax.random.normal(k_rm, (n_stats, C3), dtype=jnp.float32)
    rv3 = 1.0 + 0.1 * jax.random.uniform(k_rv, (n_stats, C3), dtype=jnp.float32)
    ws3 = spectral_normalize(
        jax.random.normal(k_ws, (C3, D), dtype=jnp.float32) / jnp.sqrt(D))
    wo3 = spectral_normalize(
        jax.random.normal(k_wo, (C3, D), dtype=jnp.float32) / jnp.sqrt(D))
    x3 = jax.random.normal(k_x3, (B3, C3, H3, W3), dtype=jnp.float32)

    out3 = jax.block_until_ready(
        biggan_batchnorm(x3, truncation, cond, rm3, rv3, ws3, wo3,
                         eps=eps, n_stats=n_stats))
    ref3 = biggan_batchnorm_ref(x3, truncation, cond, rm3, rv3, ws3, wo3,
                                eps=eps, n_stats=n_stats)
    assert jnp.allclose(out3, ref3, atol=1e-4, rtol=1e-4), "mismatch (grouped)"

    print("KERNEL_OK")
</pallas_src>

<mosaic_0001>
module attributes {stable_mosaic.version = 11 : i64} {
  func.func @_affine_kernel_packed(%arg0: i32, %arg1: i32, %arg2: i32, %arg3: memref<2x4x2xf32, #tpu.memory_space<vmem>>, %arg4: memref<2x4x256xf32, #tpu.memory_space<vmem>>, %arg5: memref<2x4x256xf32, #tpu.memory_space<vmem>>) attributes {dimension_semantics = [#tpu.dimension_semantics<parallel>, #tpu.dimension_semantics<parallel>, #tpu.dimension_semantics<parallel>], iteration_bounds = array<i64: 1, 1, 1>, scalar_prefetch = 0 : i64, scratch_operands = 0 : i64, tpu.core_type = #tpu.core_type<tc>, window_params = [{transform_indices = @transform_0, window_bounds = array<i64: 2, 4, 2>}, {transform_indices = @transform_1, window_bounds = array<i64: 2, 4, 256>}, {transform_indices = @transform_2, window_bounds = array<i64: 2, 4, 256>}]} {
    %c0 = arith.constant 0 : index
    %c0_0 = arith.constant 0 : index
    %c0_1 = arith.constant 0 : index
    %0 = vector.load %arg3[%c0, %c0_0, %c0_1] : memref<2x4x2xf32, #tpu.memory_space<vmem>>, vector<2x4x2xf32>
    %1 = vector.extract_strided_slice %0 {offsets = [0, 0, 0], sizes = [2, 4, 1], strides = [1, 1, 1]} : vector<2x4x2xf32> to vector<2x4x1xf32>
    %2 = vector.extract_strided_slice %0 {offsets = [0, 0, 1], sizes = [2, 4, 1], strides = [1, 1, 1]} : vector<2x4x2xf32> to vector<2x4x1xf32>
    %c0_2 = arith.constant 0 : index
    %c0_3 = arith.constant 0 : index
    %c0_4 = arith.constant 0 : index
    %3 = vector.load %arg4[%c0_2, %c0_3, %c0_4] : memref<2x4x256xf32, #tpu.memory_space<vmem>>, vector<2x4x256xf32>
    %4 = vector.broadcast %1 : vector<2x4x1xf32> to vector<2x4x256xf32>
    %5 = arith.mulf %3, %4 : vector<2x4x256xf32>
    %6 = vector.broadcast %2 : vector<2x4x1xf32> to vector<2x4x256xf32>
    %7 = arith.addf %5, %6 : vector<2x4x256xf32>
    %c0_5 = arith.constant 0 : index
    %c0_6 = arith.constant 0 : index
    %c0_7 = arith.constant 0 : index
    %8 = vector.load %arg5[%c0_5, %c0_6, %c0_7] : memref<2x4x256xf32, #tpu.memory_space<vmem>>, vector<2x4x256xf32>
    tpu.vector_store %arg5[%c0_5, %c0_6, %c0_7], %7 {strides = array<i32>} : memref<2x4x256xf32, #tpu.memory_space<vmem>>, vector<2x4x256xf32>,
    return
  }
  func.func @transform_0(%arg0: i32, %arg1: i32, %arg2: i32) -> (i32, i32, i32) {
    %c0_i32 = arith.constant 0 : i32
    %c0_i32_0 = arith.constant 0 : i32
    return %arg0, %arg1, %c0_i32 : i32, i32, i32
  }
  func.func @transform_1(%arg0: i32, %arg1: i32, %arg2: i32) -> (i32, i32, i32) {
    %c0_i32 = arith.constant 0 : i32
    return %arg0, %arg1, %arg2 : i32, i32, i32
  }
  func.func @transform_2(%arg0: i32, %arg1: i32, %arg2: i32) -> (i32, i32, i32) {
    %c0_i32 = arith.constant 0 : i32
    return %arg0, %arg1, %arg2 : i32, i32, i32
  }
}

</mosaic_0001>

<llo_original>
// kernel: tpu_custom_call.1
$region0: #{tpu_custom_call.1}
  #allocation0 [shape = 'u32[]', space=smem, size = 0x4, offset = 0x4, fixed_abs, tag = 'smem constant byte address 0x4 - core index']
  #allocation1 [shape = 'u32[72,128]{1,0:T(1,128)}', space=vmem, size = 0x9000, scoped, tag = 'internal scratch']
  %s0 = inlined_call_operand.vmem [shape: f32[2,4,2], index: 0, kind: input, shape index: {}]
  %s1 = inlined_call_operand.hbm [shape: f32[2,4,256], index: 1, kind: input, shape index: {}]
  %s2 = inlined_call_operand.hbm [shape: f32[2,4,256], index: 2, kind: output, shape index: {}]
  %s3 = sld [smem:[#allocation0]]
  $region22: #{tpu_custom_call.1} parent=0
    _
  %s5 = ssub.s32 1, %s3
  %s6 = scalar_select 0, %s5, %s3
  $region1: #{tpu_custom_call.1} parent=0
    #allocation2 [shape = 'u8[8192]{0}', space=vmem, size = 0x2000, scoped, tag = 'input window, operand 1, single buffered']
    #allocation3 [shape = 's32[1]{0}', space=sflag, size = 0x4, scoped, tag = 'scoped memory for tpu_custom_call.1']
    #allocation4 [shape = 's32[1]{0}', space=sflag, size = 0x4, scoped, tag = 'scoped memory for tpu_custom_call.1']
    #allocation5 [shape = 'u8[8192]{0}', space=vmem, size = 0x2000, scoped, tag = 'output window, operand 0, single buffered']
    %7 = vsyncpa [#allocation3], 0
    %8 = vsyncpa [#allocation4], 0
    // Predicated region
    $region2: #{tpu_custom_call.1} parent=1 // pred_check
      _
    $region3: #{tpu_custom_call.1} parent=1 // pred_check_branch
      %10 = sbr.rel (0) target = $region5
    $region4: #{tpu_custom_call.1} parent=1 // pred_region
      _
    $region5: #{tpu_custom_call.1} parent=1 // pred_fallthru
      _
    // Predicated region
    $region6: #{tpu_custom_call.1} parent=1 // pred_check
      _
    $region7: #{tpu_custom_call.1} parent=1 // pred_check_branch
      %12 = sbr.rel (0) target = $region9
    $region8: #{tpu_custom_call.1} parent=1 // pred_region
      %14 = vsyncadd [#allocation3], 0
      %s15 = sshll.u32 %s1, 4
      %s16 = int_to_ptr.hbm [resolvable:$true] %s15
      %s17 = sshll.u32 [#allocation2], 4
      %s18 = int_to_ptr.vmem [resolvable:$true] %s17
      %23 = dma.hbm_to_vmem [thread:$0]  %s16, 256, %s18, [#allocation3], 128, 128, 8
    $region9: #{tpu_custom_call.1} parent=1 // pred_fallthru
      _
    // Predicated region
    $region10: #{tpu_custom_call.1} parent=1 // pred_check
      _
    $region11: #{tpu_custom_call.1} parent=1 // pred_check_branch
      %25 = sbr.rel (0) target = $region13
    $region12: #{tpu_custom_call.1} parent=1 // pred_region
      %27 = dma.done [#allocation3], 256
    $region13: #{tpu_custom_call.1} parent=1 // pred_fallthru
      _
    %v28 = vld [vmem:[%s0] sm:$0xf]
    %v29 = vld [vmem:[%s0 + $0x4] sm:$0xf]
    %v30 = vld [vmem:[#allocation2] sm:$0xff]
    %v31 = vld [vmem:[#allocation2 + $0x8] sm:$0xff]
    %33 = vset.pattern.permute.xlu0 0
    %34 = vperm.xlu0 %33, %v28
    %v35 = vpop.permute.xlu0 %34
    %37 = vset.pattern.permute.xlu0 0
    %38 = vperm.xlu0 %37, %v29
    %v39 = vpop.permute.xlu0 %38
    %v41 = vunpack.c.l.s4 839922192
    %v42 = vunpack.c.0.s8 %v41
    %v43 = vperm.slane %v35, %v42
    %v45 = vunpack.c.l.s4 839922192
    %v46 = vunpack.c.0.s8 %v45
    %v47 = vperm.slane %v39, %v46
    %v50 = vmul.f32 %v30, %v43
    %v51 = vmul.f32 %v31, %v47
    %52 = vset.pattern.permute.xlu0 1
    %53 = vperm.xlu0 %52, %v28
    %v54 = vpop.permute.xlu0 %53
    %55 = vset.pattern.permute.xlu0 1
    %56 = vperm.xlu0 %55, %v29
    %v57 = vpop.permute.xlu0 %56
    %v59 = vunpack.c.l.s4 839922192
    %v60 = vunpack.c.0.s8 %v59
    %v61 = vperm.slane %v54, %v60
    %v63 = vunpack.c.l.s4 839922192
    %v64 = vunpack.c.0.s8 %v63
    %v65 = vperm.slane %v57, %v64
    %v68 = vadd.f32 %v50, %v61
    %v69 = vadd.f32 %v51, %v65
    %70 = vst [vmem:[#allocation5] sm:$0xff] %v68
    %71 = vst [vmem:[#allocation5 + $0x8] sm:$0xff] %v69
    // Predicated region
    $region14: #{tpu_custom_call.1} parent=1 // pred_check
      _
    $region15: #{tpu_custom_call.1} parent=1 // pred_check_branch
      %73 = sbr.rel (0) target = $region17
    $region16: #{tpu_custom_call.1} parent=1 // pred_region
      %75 = vsyncadd [#allocation4], 0
      %s76 = sshll.u32 [#allocation5], 4
      %s77 = int_to_ptr.vmem [resolvable:$true] %s76
      %s78 = sshll.u32 %s2, 4
      %s79 = int_to_ptr.hbm [resolvable:$true] %s78
      %84 = dma.vmem_to_hbm [thread:$0]  %s77, 256, %s79, [#allocation4], 128, 128, 8
    $region17: #{tpu_custom_call.1} parent=1 // pred_fallthru
      _
    // Predicated region
    $region18: #{tpu_custom_call.1} parent=1 // pred_check
      _
    $region19: #{tpu_custom_call.1} parent=1 // pred_check_branch
      %86 = sbr.rel (0) target = $region21
    $region20: #{tpu_custom_call.1} parent=1 // pred_region
      %88 = dma.done [#allocation4], 256
    $region21: #{tpu_custom_call.1} parent=1 // pred_fallthru
      _
    %89 = vsyncpa [#allocation3], 1
    %90 = vsyncpa [#allocation4], 1

</llo_original>
